<compile_context>
chip_gen: v5e
topology: v5e:2x2
jax: 0.10.0
libtpu: 0.0.40
codegen_flags: <defaults>
</compile_context>

<pallas_src>
import functools

import jax
import jax.numpy as jnp
from jax.experimental import pallas as pl
from jax.experimental.pallas import tpu as pltpu


def _round_up(x, m):
    return ((x + m - 1) // m) * m


def _mlp_kernel(x_ref, w1_ref, w2_ref, w3_ref, b_ref, o_ref, *, h1, h2):
    # Static slices of the fused bias slab (f32).
    b1 = b_ref[:, :h1]
    b2 = b_ref[:, h1:h1 + h2]
    b3 = b_ref[:, h1 + h2:]

    x = x_ref[...]  # bf16 (TM, in_dim)

    # fc1 + ReLU (bf16 inputs, f32 accumulation)
    h = jnp.dot(x, w1_ref[...], preferred_element_type=jnp.float32) + b1
    h = jnp.maximum(h, 0.0)

    # fc2 + ReLU
    h = jnp.dot(h.astype(w2_ref.dtype), w2_ref[...],
                preferred_element_type=jnp.float32) + b2
    h = jnp.maximum(h, 0.0)

    # fc3 + ReLU (output lanes padded to a multiple of 128)
    h = jnp.dot(h.astype(w3_ref.dtype), w3_ref[...],
                preferred_element_type=jnp.float32) + b3
    h = jnp.maximum(h, 0.0)

    o_ref[...] = h.astype(o_ref.dtype)


def net_forward(x, params, *, block_m=2048):
    """Forward pass of Net.  x: (batch, layers[0]) float32.  Returns float32."""
    w1, b1, w2, b2, w3, b3 = params
    batch, in_dim = x.shape
    h1 = w1.shape[1]
    h2 = w2.shape[1]
    out_dim = w3.shape[1]

    # --- lane-dense final layer: pad fc3 outputs to a multiple of 128 -------
    out_pad = _round_up(max(out_dim, 128), 128)
    w3p = jnp.zeros((w3.shape[0], out_pad), w3.dtype).at[:, :out_dim].set(w3)
    b3p = jnp.zeros((1, out_pad), b3.dtype).at[:, :out_dim].set(b3)

    # --- fuse biases into one operand (f32, added post-accumulation) --------
    bias = jnp.concatenate([b1, b2, b3p], axis=1).astype(jnp.float32)

    # --- bf16 weights & activations, f32 accumulation ------------------------
    w1b = w1.astype(jnp.bfloat16)
    w2b = w2.astype(jnp.bfloat16)
    w3b = w3p.astype(jnp.bfloat16)
    xb = x.astype(jnp.bfloat16)

    # --- batch tiling: TM multiple of 16 (bf16 sublane), pad batch -----------
    tm = min(block_m, _round_up(batch, 16))
    tm = _round_up(tm, 16)
    padded_batch = _round_up(batch, tm)
    if padded_batch != batch:
        xb = jnp.concatenate(
            [xb, jnp.zeros((padded_batch - batch, in_dim), xb.dtype)], axis=0)
    grid = (padded_batch // tm,)

    flops = 2 * padded_batch * (in_dim * h1 + h1 * h2 + h2 * out_pad)
    bytes_accessed = (
        padded_batch * in_dim * 2            # x (bf16)
        + (in_dim * h1 + h1 * h2 + h2 * out_pad) * 2   # weights (bf16)
        + bias.size * 4                      # fused bias (f32)
        + padded_batch * out_pad * 4         # output (f32)
    )

    kernel = functools.partial(_mlp_kernel, h1=h1, h2=h2)

    out = pl.pallas_call(
        kernel,
        out_shape=jax.ShapeDtypeStruct((padded_batch, out_pad), jnp.float32),
        grid=grid,
        in_specs=[
            pl.BlockSpec((tm, in_dim), lambda i: (i, 0)),      # x: tiled on batch
            pl.BlockSpec(w1b.shape, lambda i: (0, 0)),         # weights stay resident
            pl.BlockSpec(w2b.shape, lambda i: (0, 0)),
            pl.BlockSpec(w3b.shape, lambda i: (0, 0)),
            pl.BlockSpec(bias.shape, lambda i: (0, 0)),
        ],
        out_specs=pl.BlockSpec((tm, out_pad), lambda i: (i, 0)),
        compiler_params=pltpu.CompilerParams(
            dimension_semantics=("parallel",)),
        cost_estimate=pl.CostEstimate(
            flops=flops, transcendentals=0, bytes_accessed=bytes_accessed),
    )(xb, w1b, w2b, w3b, bias)

    return out[:batch, :out_dim]


def init_params(layers, key):
    """Deterministic synthetic init for the three Linear layers (f32 masters).

    Weights stored as (in, out); biases as (1, out) — matches PyTorch's
    default Linear init range (uniform +-1/sqrt(fan_in)).
    """
    ks = jax.random.split(key, 6)
    params = []
    for i in range(3):
        fan_in, fan_out = layers[i], layers[i + 1]
        bound = 1.0 / jnp.sqrt(fan_in)
        w = jax.random.uniform(ks[2 * i], (fan_in, fan_out),
                               minval=-bound, maxval=bound, dtype=jnp.float32)
        b = jax.random.uniform(ks[2 * i + 1], (1, fan_out),
                               minval=-bound, maxval=bound, dtype=jnp.float32)
        params.extend([w, b])
    return tuple(params)


def net_forward_ref(x, params):
    """Pure-JAX reference mirroring the kernel's bf16-weight / f32-acc math."""
    w1, b1, w2, b2, w3, b3 = params
    bf = jnp.bfloat16
    h = jnp.maximum(jnp.dot(x.astype(bf), w1.astype(bf),
                            preferred_element_type=jnp.float32) + b1, 0.0)
    h = jnp.maximum(jnp.dot(h.astype(bf), w2.astype(bf),
                            preferred_element_type=jnp.float32) + b2, 0.0)
    h = jnp.maximum(jnp.dot(h.astype(bf), w3.astype(bf),
                            preferred_element_type=jnp.float32) + b3, 0.0)
    return h


if __name__ == "__main__":
    layers = [32, 64, 64, 16]   # Net(layers): fc1 32->64, fc2 64->64, fc3 64->16
    batch = 8

    key = jax.random.PRNGKey(0)
    k_x, k_p = jax.random.split(key)
    x = jax.random.normal(k_x, (batch, layers[0]), dtype=jnp.float32)
    params = init_params(layers, k_p)

    out = net_forward(x, params)
    out = jax.block_until_ready(out)

    ref = net_forward_ref(x, params)
    assert out.shape == (batch, layers[3])
    assert jnp.allclose(out, ref, atol=2e-2, rtol=2e-2)

    print("KERNEL_OK")
</pallas_src>

<mosaic_0001>
module attributes {stable_mosaic.version = 11 : i64} {
  func.func @_mlp_kernel(%arg0: i32, %arg1: memref<16x32xbf16, #tpu.memory_space<vmem>>, %arg2: memref<32x64xbf16, #tpu.memory_space<vmem>>, %arg3: memref<64x64xbf16, #tpu.memory_space<vmem>>, %arg4: memref<64x128xbf16, #tpu.memory_space<vmem>>, %arg5: memref<1x256xf32, #tpu.memory_space<vmem>>, %arg6: memref<16x128xf32, #tpu.memory_space<vmem>>) attributes {dimension_semantics = [#tpu.dimension_semantics<parallel>], iteration_bounds = array<i64: 1>, scalar_prefetch = 0 : i64, scratch_operands = 0 : i64, tpu.core_type = #tpu.core_type<tc>, window_params = [{transform_indices = @transform_0, window_bounds = array<i64: 16, 32>}, {pipeline_mode = #tpu.pipeline_mode<synchronous>, transform_indices = @transform_1, window_bounds = array<i64: 32, 64>}, {pipeline_mode = #tpu.pipeline_mode<synchronous>, transform_indices = @transform_2, window_bounds = array<i64: 64, 64>}, {pipeline_mode = #tpu.pipeline_mode<synchronous>, transform_indices = @transform_3, window_bounds = array<i64: 64, 128>}, {pipeline_mode = #tpu.pipeline_mode<synchronous>, transform_indices = @transform_4, window_bounds = array<i64: 1, 256>}, {transform_indices = @transform_5, window_bounds = array<i64: 16, 128>}]} {
    %c0 = arith.constant 0 : index
    %c0_0 = arith.constant 0 : index
    %0 = vector.load %arg5[%c0, %c0_0] : memref<1x256xf32, #tpu.memory_space<vmem>>, vector<1x64xf32>
    %c0_1 = arith.constant 0 : index
    %c64 = arith.constant 64 : index
    %1 = vector.load %arg5[%c0_1, %c64] : memref<1x256xf32, #tpu.memory_space<vmem>>, vector<1x64xf32>
    %c0_2 = arith.constant 0 : index
    %c128 = arith.constant 128 : index
    %2 = vector.load %arg5[%c0_2, %c128] : memref<1x256xf32, #tpu.memory_space<vmem>>, vector<1x128xf32>
    %c0_3 = arith.constant 0 : index
    %c0_4 = arith.constant 0 : index
    %3 = vector.load %arg1[%c0_3, %c0_4] : memref<16x32xbf16, #tpu.memory_space<vmem>>, vector<16x32xbf16>
    %c0_5 = arith.constant 0 : index
    %c0_6 = arith.constant 0 : index
    %4 = vector.load %arg2[%c0_5, %c0_6] : memref<32x64xbf16, #tpu.memory_space<vmem>>, vector<32x64xbf16>
    %cst = arith.constant dense<0.000000e+00> : vector<16x64xf32>
    %5 = tpu.matmul %3, %4, %cst {dimension_numbers = #tpu.dot_dimension_numbers<[1], [0], [0], [1], [0, 0, 1, 1], [], []>} : vector<16x32xbf16>, vector<32x64xbf16>, vector<16x64xf32> -> vector<16x64xf32>
    %6 = vector.broadcast %0 : vector<1x64xf32> to vector<16x64xf32>
    %7 = arith.addf %5, %6 : vector<16x64xf32>
    %cst_7 = arith.constant 0.000000e+00 : f32
    %8 = vector.broadcast %cst_7 : f32 to vector<16x64xf32>
    %9 = arith.maximumf %7, %8 : vector<16x64xf32>
    %10 = arith.truncf %9 : vector<16x64xf32> to vector<16x64xbf16>
    %c0_8 = arith.constant 0 : index
    %c0_9 = arith.constant 0 : index
    %11 = vector.load %arg3[%c0_8, %c0_9] : memref<64x64xbf16, #tpu.memory_space<vmem>>, vector<64x64xbf16>
    %cst_10 = arith.constant dense<0.000000e+00> : vector<16x64xf32>
    %12 = tpu.matmul %10, %11, %cst_10 {dimension_numbers = #tpu.dot_dimension_numbers<[1], [0], [0], [1], [0, 0, 1, 1], [], []>} : vector<16x64xbf16>, vector<64x64xbf16>, vector<16x64xf32> -> vector<16x64xf32>
    %13 = vector.broadcast %1 : vector<1x64xf32> to vector<16x64xf32>
    %14 = arith.addf %12, %13 : vector<16x64xf32>
    %cst_11 = arith.constant 0.000000e+00 : f32
    %15 = vector.broadcast %cst_11 : f32 to vector<16x64xf32>
    %16 = arith.maximumf %14, %15 : vector<16x64xf32>
    %17 = arith.truncf %16 : vector<16x64xf32> to vector<16x64xbf16>
    %c0_12 = arith.constant 0 : index
    %c0_13 = arith.constant 0 : index
    %18 = vector.load %arg4[%c0_12, %c0_13] : memref<64x128xbf16, #tpu.memory_space<vmem>>, vector<64x128xbf16>
    %cst_14 = arith.constant dense<0.000000e+00> : vector<16x128xf32>
    %19 = tpu.matmul %17, %18, %cst_14 {dimension_numbers = #tpu.dot_dimension_numbers<[1], [0], [0], [1], [0, 0, 1, 1], [], []>} : vector<16x64xbf16>, vector<64x128xbf16>, vector<16x128xf32> -> vector<16x128xf32>
    %20 = vector.broadcast %2 : vector<1x128xf32> to vector<16x128xf32>
    %21 = arith.addf %19, %20 : vector<16x128xf32>
    %cst_15 = arith.constant 0.000000e+00 : f32
    %22 = vector.broadcast %cst_15 : f32 to vector<16x128xf32>
    %23 = arith.maximumf %21, %22 : vector<16x128xf32>
    %c0_16 = arith.constant 0 : index
    %c0_17 = arith.constant 0 : index
    %24 = vector.load %arg6[%c0_16, %c0_17] : memref<16x128xf32, #tpu.memory_space<vmem>>, vector<16x128xf32>
    tpu.vector_store %arg6[%c0_16, %c0_17], %23 {strides = array<i32>} : memref<16x128xf32, #tpu.memory_space<vmem>>, vector<16x128xf32>,
    return
  }
  func.func @transform_0(%arg0: i32) -> (i32, i32) {
    %c0_i32 = arith.constant 0 : i32
    %c0_i32_0 = arith.constant 0 : i32
    return %arg0, %c0_i32 : i32, i32
  }
  func.func @transform_1(%arg0: i32) -> (i32, i32) {
    %c0_i32 = arith.constant 0 : i32
    %c0_i32_0 = arith.constant 0 : i32
    %c0_i32_1 = arith.constant 0 : i32
    return %c0_i32, %c0_i32_0 : i32, i32
  }
  func.func @transform_2(%arg0: i32) -> (i32, i32) {
    %c0_i32 = arith.constant 0 : i32
    %c0_i32_0 = arith.constant 0 : i32
    %c0_i32_1 = arith.constant 0 : i32
    return %c0_i32, %c0_i32_0 : i32, i32
  }
  func.func @transform_3(%arg0: i32) -> (i32, i32) {
    %c0_i32 = arith.constant 0 : i32
    %c0_i32_0 = arith.constant 0 : i32
    %c0_i32_1 = arith.constant 0 : i32
    return %c0_i32, %c0_i32_0 : i32, i32
  }
  func.func @transform_4(%arg0: i32) -> (i32, i32) {
    %c0_i32 = arith.constant 0 : i32
    %c0_i32_0 = arith.constant 0 : i32
    %c0_i32_1 = arith.constant 0 : i32
    return %c0_i32, %c0_i32_0 : i32, i32
  }
  func.func @transform_5(%arg0: i32) -> (i32, i32) {
    %c0_i32 = arith.constant 0 : i32
    %c0_i32_0 = arith.constant 0 : i32
    return %arg0, %c0_i32 : i32, i32
  }
}

</mosaic_0001>

<llo_original>
// kernel: tpu_custom_call.1
$region0: #{tpu_custom_call.1}
  #allocation0 [shape = 'u32[]', space=smem, size = 0x4, offset = 0x4, fixed_abs, tag = 'smem constant byte address 0x4 - core index']
  #allocation1 [shape = 'u32[72,128]{1,0:T(1,128)}', space=vmem, size = 0x9000, scoped, tag = 'internal scratch']
  %s0 = inlined_call_operand.hbm [shape: bf16[16,32], index: 0, kind: input, shape index: {}]
  %s1 = inlined_call_operand.hbm [shape: bf16[32,64], index: 1, kind: input, shape index: {}]
  %s2 = inlined_call_operand.hbm [shape: bf16[64,64], index: 2, kind: input, shape index: {}]
  %s3 = inlined_call_operand.hbm [shape: bf16[64,128], index: 3, kind: input, shape index: {}]
  %s4 = inlined_call_operand.vmem [shape: f32[1,256], index: 4, kind: input, shape index: {}]
  %s5 = inlined_call_operand.hbm [shape: f32[16,128], index: 5, kind: output, shape index: {}]
  %s6 = sld [smem:[#allocation0]]
  $region46: #{tpu_custom_call.1} parent=0
    _
  %s8 = ssub.s32 1, %s6
  %s9 = scalar_select 0, %s8, %s6
  $region1: #{tpu_custom_call.1} parent=0
    #allocation2 [shape = 'u8[4096]{0}', space=vmem, size = 0x1000, scoped, tag = 'input window, operand 0, single buffered']
    #allocation3 [shape = 's32[1]{0}', space=sflag, size = 0x4, scoped, tag = 'scoped memory for tpu_custom_call.1']
    #allocation4 [shape = 's32[1]{0}', space=sflag, size = 0x4, scoped, tag = 'scoped memory for tpu_custom_call.1']
    #allocation5 [shape = 'u8[8192]{0}', space=vmem, size = 0x2000, scoped, tag = 'input window, operand 1, single buffered']
    #allocation6 [shape = 's32[1]{0}', space=sflag, size = 0x4, scoped, tag = 'scoped memory for tpu_custom_call.1']
    #allocation7 [shape = 'u8[16384]{0}', space=vmem, size = 0x4000, scoped, tag = 'input window, operand 2, single buffered']
    #allocation8 [shape = 'u8[16384]{0}', space=vmem, size = 0x4000, scoped, tag = 'input window, operand 3, single buffered']
    #allocation9 [shape = 's32[1]{0}', space=sflag, size = 0x4, scoped, tag = 'scoped memory for tpu_custom_call.1']
    #allocation10 [shape = 'u8[8192]{0}', space=vmem, size = 0x2000, scoped, tag = 'output window, operand 0, single buffered']
    %10 = vsyncpa [#allocation3], 0
    %11 = vsyncpa [#allocation6], 0
    %12 = vsyncpa [#allocation9], 0
    %13 = vsyncpa [#allocation4], 0
    // Predicated region
    $region2: #{tpu_custom_call.1} parent=1 // pred_check
      _
    $region3: #{tpu_custom_call.1} parent=1 // pred_check_branch
      %15 = sbr.rel (0) target = $region5
    $region4: #{tpu_custom_call.1} parent=1 // pred_region
      %17 = vsyncadd [#allocation3], 0
      %s18 = sshll.u32 %s0, 4
      %s19 = int_to_ptr.hbm [resolvable:$true] %s18
      %s20 = sshll.u32 [#allocation2], 4
      %s21 = int_to_ptr.vmem [resolvable:$true] %s20
      %26 = dma.hbm_to_vmem [thread:$0]  %s19, 128, %s21, [#allocation3], 64, 64, 4
    $region5: #{tpu_custom_call.1} parent=1 // pred_fallthru
      _
    // Predicated region
    $region6: #{tpu_custom_call.1} parent=1 // pred_check
      _
    $region7: #{tpu_custom_call.1} parent=1 // pred_check_branch
      %28 = sbr.rel (0) target = $region9
    $region8: #{tpu_custom_call.1} parent=1 // pred_region
      %30 = vsyncadd [#allocation6], 0
      %s31 = sshll.u32 %s1, 4
      %s32 = int_to_ptr.hbm [resolvable:$true] %s31
      %s33 = sshll.u32 [#allocation5], 4
      %s34 = int_to_ptr.vmem [resolvable:$true] %s33
      %39 = dma.hbm_to_vmem [thread:$0]  %s32, 256, %s34, [#allocation6], 64, 64, 4
    $region9: #{tpu_custom_call.1} parent=1 // pred_fallthru
      _
    // Predicated region
    $region10: #{tpu_custom_call.1} parent=1 // pred_check
      _
    $region11: #{tpu_custom_call.1} parent=1 // pred_check_branch
      %41 = sbr.rel (0) target = $region13
    $region12: #{tpu_custom_call.1} parent=1 // pred_region
      %43 = vsyncadd [#allocation6], 0
      %s44 = sshll.u32 %s2, 4
      %s45 = int_to_ptr.hbm [resolvable:$true] %s44
      %s46 = sshll.u32 [#allocation7], 4
      %s47 = int_to_ptr.vmem [resolvable:$true] %s46
      %52 = dma.hbm_to_vmem [thread:$0]  %s45, 512, %s47, [#allocation6], 64, 64, 4
    $region13: #{tpu_custom_call.1} parent=1 // pred_fallthru
      _
    // Predicated region
    $region14: #{tpu_custom_call.1} parent=1 // pred_check
      _
    $region15: #{tpu_custom_call.1} parent=1 // pred_check_branch
      %54 = sbr.rel (0) target = $region17
    $region16: #{tpu_custom_call.1} parent=1 // pred_region
      %56 = vsyncadd [#allocation9], 0
      %s57 = sshll.u32 %s3, 4
      %s58 = int_to_ptr.hbm [resolvable:$true] %s57
      %s59 = sshll.u32 [#allocation8], 4
      %s60 = int_to_ptr.vmem [resolvable:$true] %s59
      %65 = dma.hbm_to_vmem [thread:$0]  %s58, 512, %s60, [#allocation9], 64, 64, 4
    $region17: #{tpu_custom_call.1} parent=1 // pred_fallthru
      _
    // Predicated region
    $region18: #{tpu_custom_call.1} parent=1 // pred_check
      _
    $region19: #{tpu_custom_call.1} parent=1 // pred_check_branch
      %67 = sbr.rel (0) target = $region21
    $region20: #{tpu_custom_call.1} parent=1 // pred_region
      _
    $region21: #{tpu_custom_call.1} parent=1 // pred_fallthru
      _
    // Predicated region
    $region22: #{tpu_custom_call.1} parent=1 // pred_check
      _
    $region23: #{tpu_custom_call.1} parent=1 // pred_check_branch
      %69 = sbr.rel (0) target = $region25
    $region24: #{tpu_custom_call.1} parent=1 // pred_region
      %71 = dma.done [#allocation3], 128
    $region25: #{tpu_custom_call.1} parent=1 // pred_fallthru
      _
    // Predicated region
    $region26: #{tpu_custom_call.1} parent=1 // pred_check
      _
    $region27: #{tpu_custom_call.1} parent=1 // pred_check_branch
      %73 = sbr.rel (0) target = $region29
    $region28: #{tpu_custom_call.1} parent=1 // pred_region
      %75 = dma.done [#allocation6], 256
    $region29: #{tpu_custom_call.1} parent=1 // pred_fallthru
      _
    // Predicated region
    $region30: #{tpu_custom_call.1} parent=1 // pred_check
      _
    $region31: #{tpu_custom_call.1} parent=1 // pred_check_branch
      %77 = sbr.rel (0) target = $region33
    $region32: #{tpu_custom_call.1} parent=1 // pred_region
      %79 = dma.done [#allocation6], 512
    $region33: #{tpu_custom_call.1} parent=1 // pred_fallthru
      _
    // Predicated region
    $region34: #{tpu_custom_call.1} parent=1 // pred_check
      _
    $region35: #{tpu_custom_call.1} parent=1 // pred_check_branch
      %81 = sbr.rel (0) target = $region37
    $region36: #{tpu_custom_call.1} parent=1 // pred_region
      %83 = dma.done [#allocation9], 512
    $region37: #{tpu_custom_call.1} parent=1 // pred_fallthru
      _
    %v85 = vld [vmem:[%s4] sm:$0x1]
    %v86 = vld [vmem:[%s4 + $0x1] sm:$0x1]
    %v87 = vld [vmem:[#allocation2] sm:$0xf]
    %v88 = vld [vmem:[#allocation2 + $0x4] sm:$0xf]
    %v89 = vld [vmem:[#allocation5] sm:$0xf]
    %v90 = vld [vmem:[#allocation5 + $0x4] sm:$0xf]
    %v91 = vld [vmem:[#allocation5 + $0x8] sm:$0xf]
    %v92 = vld [vmem:[#allocation5 + $0xc] sm:$0xf]
    %v94 = vperm.slane %v85, 0
    %v98 = vunpack.c.l.b16 %v87
    %v99 = vunpack.c.l.b16 %v88
    %v100 = vpack.c.b16 %v99, %v98
    %v105 = vunpack.c.l.b16 %v89
    %v106 = vunpack.c.l.b16 %v90
    %v107 = vunpack.c.l.b16 %v91
    %v108 = vunpack.c.l.b16 %v92
    %v109 = vpack.c.b16 %v106, %v105
    %v110 = vpack.c.b16 %v108, %v107
    %vm113 = vcmask 261120
    %v115 = vsel %vm113, %v100, 0
    %117 = vmatpush.bf16.msra.mxu0 0
    %118 = vmatpush.bf16.msra.mxu0 0
    %119 = vmatpush.bf16.msra.mxu0 0
    %120 = vmatpush.bf16.msra.mxu0 0
    %121 = vmatpush.bf16.msra.mxu0 0
    %122 = vmatpush.bf16.msra.mxu0 0
    %123 = vmatpush.bf16.msra.mxu0 %v110
    %124 = vmatpush.bf16.msra.mxu0 %v109
    %125 = vmatmul.bf16.gmra.mxu0 %v115
    %v126 = vpop.f32.mrf.mxu0
    %v127 = vadd.f32 %v94, %v126
    %v128 = vpop.f32.mrf.mxu0
    %v129 = vadd.f32 %v94, %v128
    %130 = vdwg.mxu0
    %v131 = vmax.f32 %v127, 0.0
    %v132 = vmax.f32 %v129, 0.0
    %v133 = vpack.c.bf16 %v132, %v131
    %v134 = vld [vmem:[#allocation7] sm:$0xf]
    %v135 = vld [vmem:[#allocation7 + $0x4] sm:$0xf]
    %v136 = vld [vmem:[#allocation7 + $0x8] sm:$0xf]
    %v137 = vld [vmem:[#allocation7 + $0xc] sm:$0xf]
    %v138 = vld [vmem:[#allocation7 + $0x10] sm:$0xf]
    %v139 = vld [vmem:[#allocation7 + $0x14] sm:$0xf]
    %v140 = vld [vmem:[#allocation7 + $0x18] sm:$0xf]
    %v141 = vld [vmem:[#allocation7 + $0x1c] sm:$0xf]
    %v150 = vunpack.c.l.b16 %v134
    %v151 = vunpack.c.l.b16 %v135
    %v152 = vunpack.c.l.b16 %v136
    %v153 = vunpack.c.l.b16 %v137
    %v154 = vunpack.c.l.b16 %v138
    %v155 = vunpack.c.l.b16 %v139
    %v156 = vunpack.c.l.b16 %v140
    %v157 = vunpack.c.l.b16 %v141
    %v158 = vpack.c.b16 %v151, %v150
    %v159 = vpack.c.b16 %v153, %v152
    %v160 = vpack.c.b16 %v155, %v154
    %v161 = vpack.c.b16 %v157, %v156
    %166 = vrot.lane.b32.xlu0 %v94, 64
    %v167 = vpop.permute.xlu0 %166
    %vm169 = vcmask 523264
    %v171 = vsel %vm169, %v133, 0
    %173 = vmatpush.bf16.msra.mxu0 0
    %174 = vmatpush.bf16.msra.mxu0 0
    %175 = vmatpush.bf16.msra.mxu0 0
    %176 = vmatpush.bf16.msra.mxu0 0
    %177 = vmatpush.bf16.msra.mxu0 %v161
    %178 = vmatpush.bf16.msra.mxu0 %v160
    %179 = vmatpush.bf16.msra.mxu0 %v159
    %180 = vmatpush.bf16.msra.mxu0 %v158
    %181 = vmatmul.bf16.gmra.mxu0 %v171
    %v182 = vpop.f32.mrf.mxu0
    %v183 = vadd.f32 %v167, %v182
    %v184 = vpop.f32.mrf.mxu0
    %v185 = vadd.f32 %v167, %v184
    %186 = vdwg.mxu0
    %v187 = vmax.f32 %v183, 0.0
    %v188 = vmax.f32 %v185, 0.0
    %v189 = vpack.c.bf16 %v188, %v187
    %v190 = vld [vmem:[#allocation8] sm:$0xf]
    %v191 = vld [vmem:[#allocation8 + $0x4] sm:$0xf]
    %v192 = vld [vmem:[#allocation8 + $0x8] sm:$0xf]
    %v193 = vld [vmem:[#allocation8 + $0xc] sm:$0xf]
    %v194 = vld [vmem:[#allocation8 + $0x10] sm:$0xf]
    %v195 = vld [vmem:[#allocation8 + $0x14] sm:$0xf]
    %v196 = vld [vmem:[#allocation8 + $0x18] sm:$0xf]
    %v197 = vld [vmem:[#allocation8 + $0x1c] sm:$0xf]
    %v199 = vperm.slane %v86, 0
    %v209 = vunpack.c.l.b16 %v190
    %v210 = vunpack.c.l.b16 %v191
    %v211 = vunpack.c.l.b16 %v192
    %v212 = vunpack.c.l.b16 %v193
    %v213 = vunpack.c.l.b16 %v194
    %v214 = vunpack.c.l.b16 %v195
    %v215 = vunpack.c.l.b16 %v196
    %v216 = vunpack.c.l.b16 %v197
    %v217 = vpack.c.b16 %v210, %v209
    %v218 = vpack.c.b16 %v212, %v211
    %v219 = vpack.c.b16 %v214, %v213
    %v220 = vpack.c.b16 %v216, %v215
    %v226 = vsel %vm169, %v189, 0
    %228 = vmatpush.bf16.msra.mxu0 0
    %229 = vmatpush.bf16.msra.mxu0 0
    %230 = vmatpush.bf16.msra.mxu0 0
    %231 = vmatpush.bf16.msra.mxu0 0
    %232 = vmatpush.bf16.msra.mxu0 %v220
    %233 = vmatpush.bf16.msra.mxu0 %v219
    %234 = vmatpush.bf16.msra.mxu0 %v218
    %235 = vmatpush.bf16.msra.mxu0 %v217
    %236 = vmatmul.bf16.gmra.mxu0 %v226
    %v237 = vpop.f32.mrf.mxu0
    %v238 = vadd.f32 %v199, %v237
    %v239 = vpop.f32.mrf.mxu0
    %v240 = vadd.f32 %v199, %v239
    %241 = vdwg.mxu0
    %v242 = vmax.f32 %v238, 0.0
    %v243 = vmax.f32 %v240, 0.0
    %244 = vst [vmem:[#allocation10] sm:$0xff] %v242
    %245 = vst [vmem:[#allocation10 + $0x8] sm:$0xff] %v243
    // Predicated region
    $region38: #{tpu_custom_call.1} parent=1 // pred_check
      _
    $region39: #{tpu_custom_call.1} parent=1 // pred_check_branch
      %247 = sbr.rel (0) target = $region41
    $region40: #{tpu_custom_call.1} parent=1 // pred_region
      %249 = vsyncadd [#allocation4], 0
      %s250 = sshll.u32 [#allocation10], 4
      %s251 = int_to_ptr.vmem [resolvable:$true] %s250
      %s252 = sshll.u32 %s5, 4
      %s253 = int_to_ptr.hbm [resolvable:$true] %s252
      %258 = dma.vmem_to_hbm [thread:$0]  %s251, 256, %s253, [#allocation4], 128, 128, 8
    $region41: #{tpu_custom_call.1} parent=1 // pred_fallthru
      _
    // Predicated region
    $region42: #{tpu_custom_call.1} parent=1 // pred_check
      _
    $region43: #{tpu_custom_call.1} parent=1 // pred_check_branch
      %260 = sbr.rel (0) target = $region45
    $region44: #{tpu_custom_call.1} parent=1 // pred_region
      %262 = dma.done [#allocation4], 256
    $region45: #{tpu_custom_call.1} parent=1 // pred_fallthru
      _
    %263 = vsyncpa [#allocation3], 1
    %264 = vsyncpa [#allocation6], 1
    %265 = vsyncpa [#allocation9], 1
    %266 = vsyncpa [#allocation4], 1

</llo_original>
